<compile_context>
chip_gen: v6e
topology: v6e:2x2x1
jax: 0.10.0
libtpu: 0.0.40
codegen_flags: <defaults>
</compile_context>

<pallas_src>
import jax
import jax.numpy as jnp
from jax.experimental import pallas as pl
from jax.experimental.pallas import tpu as pltpu

NUM_INPUTS = 784     # 1 * 28 * 28
NUM_OUTPUTS = 10
W_LANE_PAD = 128     # W is lane-padded to 128 columns in VMEM (MXU-friendly)


def _linear_kernel(x_ref, w_ref, b_ref, o_ref):
    # x_ref: (tn, 784)  w_ref: (784, 128)  b_ref: (1, 10)  o_ref: (tn, 10)
    # Single MXU matmul against the lane-padded resident weight, then a
    # narrow (masked-vst) store of the real 10 logit columns + bias.
    acc = jnp.dot(x_ref[...], w_ref[...], preferred_element_type=jnp.float32)
    o_ref[...] = (acc[:, :NUM_OUTPUTS] + b_ref[...]).astype(o_ref.dtype)


def pad_params(w, b):
    """One-time parameter prep (hoisted out of the forward path).

    w: (784, 10) float32  (transposed vs. torch's (out, in) convention)
    b: (10,)     float32
    returns (w_pad: (784, 128) f32, b2: (1, 10) f32)
    """
    assert w.shape == (NUM_INPUTS, NUM_OUTPUTS), (
        f"w must be (in={NUM_INPUTS}, out={NUM_OUTPUTS}); got {w.shape} "
        "(torch's native (out, in) layout must be transposed first)")
    assert b.shape == (NUM_OUTPUTS,), f"b must be ({NUM_OUTPUTS},); got {b.shape}"
    w_pad = (jnp.zeros((NUM_INPUTS, W_LANE_PAD), jnp.float32)
             .at[:, :NUM_OUTPUTS].set(w.astype(jnp.float32)))
    b2 = b.astype(jnp.float32).reshape(1, NUM_OUTPUTS)
    return w_pad, b2


def _default_tile_n():
    # v5e: 16 MiB default scoped VMEM -> keep 1024 (already ~90% of roofline).
    # v6e / v7x: 32 MiB default scoped VMEM, faster HBM -> 2048 amortizes the
    # ~0.35 us per-grid-step overhead (still well under VMEM with narrow out).
    try:
        kind = jax.devices()[0].device_kind.lower()
    except Exception:
        return 1024
    if "v2" in kind or "v3" in kind or "v4" in kind or "v5" in kind:
        return 1024
    return 2048


def _choose_tile_n(n, tile_n):
    if n <= 32:
        # Single full block; block dims == array dims satisfies the (8,128)
        # rule without any padding.
        return n
    if n <= tile_n:
        # Small/moderate batch: shrink the tile so the grid keeps >=~4 steps
        # (work for both v7x TensorCores + overlap for double-buffering),
        # rounded up to a sublane multiple of 8.
        return min(tile_n, ((pl.cdiv(n, 4) + 7) // 8) * 8)
    return tile_n


def linear_net_forward(x, w_pad, b2, tile_n=None):
    """Forward pass equivalent to LinearNet.forward.

    x:     (N, C, H, W) float32 with C*H*W == 784
    w_pad: (784, 128) float32 from pad_params()
    b2:    (1, 10)    float32 from pad_params()
    returns: (N, 10) float32
    """
    n = x.shape[0]
    x_flat = x.reshape(n, -1).astype(jnp.float32)   # same as torch .view(n, -1)
    assert x_flat.shape[1] == NUM_INPUTS, (
        f"x flattens to {x_flat.shape[1]} features, expected {NUM_INPUTS}")

    if tile_n is None:
        tile_n = _default_tile_n()
    tn = _choose_tile_n(n, tile_n)
    grid = pl.cdiv(n, tn)   # ragged last block is fine: rows are independent
                            # and Pallas masks overhang rows on writeback.

    cost = pl.CostEstimate(
        flops=2 * n * NUM_INPUTS * NUM_OUTPUTS,
        transcendentals=0,
        bytes_accessed=(n * NUM_INPUTS * 4            # x read (dominant)
                        + NUM_INPUTS * W_LANE_PAD * 4  # W read
                        + NUM_OUTPUTS * 4              # b read
                        + n * NUM_OUTPUTS * 4))        # y write

    out = pl.pallas_call(
        _linear_kernel,
        out_shape=jax.ShapeDtypeStruct((n, NUM_OUTPUTS), jnp.float32),
        grid_spec=pl.GridSpec(
            grid=(grid,),
            in_specs=[
                # x: one fresh batch tile per grid step (double-buffered DMA).
                pl.BlockSpec((tn, NUM_INPUTS), lambda i: (i, 0)),
                # W, b: constant block index -> stay resident in VMEM.
                pl.BlockSpec((NUM_INPUTS, W_LANE_PAD), lambda i: (0, 0)),
                pl.BlockSpec((1, NUM_OUTPUTS), lambda i: (0, 0)),
            ],
            # Narrow (tn, 10) output block: legal (last dim == full array dim),
            # masked vst stores hit the vst slot which has plenty of slack.
            out_specs=pl.BlockSpec((tn, NUM_OUTPUTS), lambda i: (i, 0)),
        ),
        compiler_params=pltpu.CompilerParams(
            # Batch tiles are independent -> shard across v7x's two TCs.
            dimension_semantics=("parallel",)),
        cost_estimate=cost,
    )(x_flat, w_pad, b2)

    return out


if __name__ == "__main__":
    key = jax.random.PRNGKey(0)
    kx, kw, kb = jax.random.split(key, 3)

    # Small deterministic example consistent with the module: N=2, C=1, H=W=28
    x = jax.random.normal(kx, (2, 1, 28, 28), dtype=jnp.float32)

    # Deterministic parameter init (synthetic; mimics nn.Linear's uniform range)
    bound = 1.0 / (NUM_INPUTS ** 0.5)
    w = jax.random.uniform(kw, (NUM_INPUTS, NUM_OUTPUTS), jnp.float32,
                           minval=-bound, maxval=bound)
    b = jax.random.uniform(kb, (NUM_OUTPUTS,), jnp.float32,
                           minval=-bound, maxval=bound)

    # One-time parameter prep (hoisted out of the forward path).
    w_pad, b2 = pad_params(w, b)

    y = linear_net_forward(x, w_pad, b2)
    y = jax.block_until_ready(y)

    # Cross-check against plain-JAX reference
    y_ref = x.reshape(x.shape[0], -1) @ w + b
    assert y.shape == (2, NUM_OUTPUTS)
    assert jnp.allclose(y, y_ref, atol=1e-5, rtol=1e-5)

    print("KERNEL_OK")
</pallas_src>

<mosaic_0001>
module attributes {stable_mosaic.version = 11 : i64} {
  func.func @_linear_kernel(%arg0: i32, %arg1: memref<2x784xf32, #tpu.memory_space<vmem>>, %arg2: memref<784x128xf32, #tpu.memory_space<vmem>>, %arg3: memref<1x10xf32, #tpu.memory_space<vmem>>, %arg4: memref<2x10xf32, #tpu.memory_space<vmem>>) attributes {dimension_semantics = [#tpu.dimension_semantics<parallel>], iteration_bounds = array<i64: 1>, scalar_prefetch = 0 : i64, scratch_operands = 0 : i64, tpu.core_type = #tpu.core_type<tc>, window_params = [{transform_indices = @transform_0, window_bounds = array<i64: 2, 784>}, {pipeline_mode = #tpu.pipeline_mode<synchronous>, transform_indices = @transform_1, window_bounds = array<i64: 784, 128>}, {pipeline_mode = #tpu.pipeline_mode<synchronous>, transform_indices = @transform_2, window_bounds = array<i64: 1, 10>}, {transform_indices = @transform_3, window_bounds = array<i64: 2, 10>}]} {
    %c0 = arith.constant 0 : index
    %c0_0 = arith.constant 0 : index
    %0 = vector.load %arg1[%c0, %c0_0] : memref<2x784xf32, #tpu.memory_space<vmem>>, vector<2x784xf32>
    %c0_1 = arith.constant 0 : index
    %c0_2 = arith.constant 0 : index
    %1 = vector.load %arg2[%c0_1, %c0_2] : memref<784x128xf32, #tpu.memory_space<vmem>>, vector<784x128xf32>
    %cst = arith.constant dense<0.000000e+00> : vector<2x128xf32>
    %2 = tpu.matmul %0, %1, %cst {dimension_numbers = #tpu.dot_dimension_numbers<[1], [0], [0], [1], [0, 0, 1, 1], [], []>} : vector<2x784xf32>, vector<784x128xf32>, vector<2x128xf32> -> vector<2x128xf32>
    %3 = vector.extract_strided_slice %2 {offsets = [0, 0], sizes = [2, 10], strides = [1, 1]} : vector<2x128xf32> to vector<2x10xf32>
    %c0_3 = arith.constant 0 : index
    %c0_4 = arith.constant 0 : index
    %4 = vector.load %arg3[%c0_3, %c0_4] : memref<1x10xf32, #tpu.memory_space<vmem>>, vector<1x10xf32>
    %5 = vector.broadcast %4 : vector<1x10xf32> to vector<2x10xf32>
    %6 = arith.addf %3, %5 : vector<2x10xf32>
    %c0_5 = arith.constant 0 : index
    %c0_6 = arith.constant 0 : index
    %7 = vector.load %arg4[%c0_5, %c0_6] : memref<2x10xf32, #tpu.memory_space<vmem>>, vector<2x10xf32>
    tpu.vector_store %arg4[%c0_5, %c0_6], %6 {strides = array<i32>} : memref<2x10xf32, #tpu.memory_space<vmem>>, vector<2x10xf32>,
    return
  }
  func.func @transform_0(%arg0: i32) -> (i32, i32) {
    %c0_i32 = arith.constant 0 : i32
    %c0_i32_0 = arith.constant 0 : i32
    return %arg0, %c0_i32 : i32, i32
  }
  func.func @transform_1(%arg0: i32) -> (i32, i32) {
    %c0_i32 = arith.constant 0 : i32
    %c0_i32_0 = arith.constant 0 : i32
    %c0_i32_1 = arith.constant 0 : i32
    return %c0_i32, %c0_i32_0 : i32, i32
  }
  func.func @transform_2(%arg0: i32) -> (i32, i32) {
    %c0_i32 = arith.constant 0 : i32
    %c0_i32_0 = arith.constant 0 : i32
    %c0_i32_1 = arith.constant 0 : i32
    return %c0_i32, %c0_i32_0 : i32, i32
  }
  func.func @transform_3(%arg0: i32) -> (i32, i32) {
    %c0_i32 = arith.constant 0 : i32
    %c0_i32_0 = arith.constant 0 : i32
    return %arg0, %c0_i32 : i32, i32
  }
}

</mosaic_0001>

<llo_original>
// kernel: tpu_custom_call.1
$region0: #{tpu_custom_call.1}
  #allocation0 [shape = 'u32[]', space=smem, size = 0x4, offset = 0x4, fixed_abs, tag = 'smem constant byte address 0x4 - core index']
  #allocation1 [shape = 'u32[144,128]{1,0:T(1,128)}', space=vmem, size = 0x12000, scoped, tag = 'internal scratch']
  %s0 = inlined_call_operand.hbm [shape: f32[2,784], index: 0, kind: input, shape index: {}]
  %s1 = inlined_call_operand.hbm [shape: f32[784,128], index: 1, kind: input, shape index: {}]
  %s2 = inlined_call_operand.vmem [shape: f32[1,10], index: 2, kind: input, shape index: {}]
  %s3 = inlined_call_operand.hbm [shape: f32[2,10], index: 3, kind: output, shape index: {}]
  %s4 = sld [smem:[#allocation0]]
  $region30: #{tpu_custom_call.1} parent=0
    _
  %s6 = ssub.s32 1, %s4
  %s7 = scalar_select 0, %s6, %s4
  $region1: #{tpu_custom_call.1} parent=0
    #allocation2 [shape = 'u8[7168]{0}', space=vmem, size = 0x1c00, scoped, tag = 'input window, operand 0, single buffered']
    #allocation3 [shape = 's32[1]{0}', space=sflag, size = 0x4, scoped, tag = 'scoped memory for tpu_custom_call.1']
    #allocation4 [shape = 's32[1]{0}', space=sflag, size = 0x4, scoped, tag = 'scoped memory for tpu_custom_call.1']
    #allocation5 [shape = 'u8[401408]{0}', space=vmem, size = 0x62000, scoped, tag = 'input window, operand 1, single buffered']
    #allocation6 [shape = 's32[1]{0}', space=sflag, size = 0x4, scoped, tag = 'scoped memory for tpu_custom_call.1']
    #allocation7 [shape = 'u8[1024]{0}', space=vmem, size = 0x400, scoped, tag = 'output window, operand 0, single buffered']
    %8 = vsyncpa [#allocation3], 0
    %9 = vsyncpa [#allocation6], 0
    %10 = vsyncpa [#allocation4], 0
    // Predicated region
    $region2: #{tpu_custom_call.1} parent=1 // pred_check
      _
    $region3: #{tpu_custom_call.1} parent=1 // pred_check_branch
      %12 = sbr.rel (0) target = $region5
    $region4: #{tpu_custom_call.1} parent=1 // pred_region
      %s14 = ssub.s32 224, 224
      %15 = vsyncadd [#allocation3], %s14
      %s17 = sshll.u32 [#allocation2], 4
      %s18 = int_to_ptr.vmem [resolvable:$true] %s17
      %20 = dma.hbm_to_vmem [thread:$0]  %s0, 224, %s18, [#allocation3]
    $region5: #{tpu_custom_call.1} parent=1 // pred_fallthru
      _
    // Predicated region
    $region6: #{tpu_custom_call.1} parent=1 // pred_check
      _
    $region7: #{tpu_custom_call.1} parent=1 // pred_check_branch
      %22 = sbr.rel (0) target = $region9
    $region8: #{tpu_custom_call.1} parent=1 // pred_region
      %s24 = ssub.s32 12544, 12544
      %25 = vsyncadd [#allocation6], %s24
      %s26 = sshll.u32 [#allocation5], 4
      %s27 = int_to_ptr.vmem [resolvable:$true] %s26
      %32 = dma.hbm_to_vmem [thread:$0]  %s1, 12544, %s27, [#allocation6], 128, 128, 8
    $region9: #{tpu_custom_call.1} parent=1 // pred_fallthru
      _
    // Predicated region
    $region10: #{tpu_custom_call.1} parent=1 // pred_check
      _
    $region11: #{tpu_custom_call.1} parent=1 // pred_check_branch
      %34 = sbr.rel (0) target = $region13
    $region12: #{tpu_custom_call.1} parent=1 // pred_region
      _
    $region13: #{tpu_custom_call.1} parent=1 // pred_fallthru
      _
    // Predicated region
    $region14: #{tpu_custom_call.1} parent=1 // pred_check
      _
    $region15: #{tpu_custom_call.1} parent=1 // pred_check_branch
      %36 = sbr.rel (0) target = $region17
    $region16: #{tpu_custom_call.1} parent=1 // pred_region
      %37 = dma.done [#allocation3], 224
    $region17: #{tpu_custom_call.1} parent=1 // pred_fallthru
      _
    // Predicated region
    $region18: #{tpu_custom_call.1} parent=1 // pred_check
      _
    $region19: #{tpu_custom_call.1} parent=1 // pred_check_branch
      %39 = sbr.rel (0) target = $region21
    $region20: #{tpu_custom_call.1} parent=1 // pred_region
      %40 = dma.done [#allocation6], 12544
    $region21: #{tpu_custom_call.1} parent=1 // pred_fallthru
      _
    %v41 = vld [vmem:[#allocation2] sm:$0xff]
    %v42 = vld [vmem:[#allocation2 + $0x8] sm:$0x3f]
    %v43 = vld [vmem:[#allocation5] sm:$0xff]
    %v44 = vld [vmem:[#allocation5 + $0x8] sm:$0xff]
    %v45 = vld [vmem:[#allocation5 + $0x10] sm:$0xff]
    %v46 = vld [vmem:[#allocation5 + $0x18] sm:$0xff]
    %v47 = vld [vmem:[#allocation5 + $0x20] sm:$0xff]
    %v48 = vld [vmem:[#allocation5 + $0x28] sm:$0xff]
    %v49 = vld [vmem:[#allocation5 + $0x30] sm:$0xff]
    %v50 = vld [vmem:[#allocation5 + $0x38] sm:$0xff]
    %v51 = vld [vmem:[#allocation5 + $0x40] sm:$0xff]
    %v52 = vld [vmem:[#allocation5 + $0x48] sm:$0xff]
    %v53 = vld [vmem:[#allocation5 + $0x50] sm:$0xff]
    %v54 = vld [vmem:[#allocation5 + $0x58] sm:$0xff]
    %v55 = vld [vmem:[#allocation5 + $0x60] sm:$0xff]
    %v56 = vld [vmem:[#allocation5 + $0x68] sm:$0xff]
    %v57 = vld [vmem:[#allocation5 + $0x70] sm:$0xff]
    %v58 = vld [vmem:[#allocation5 + $0x78] sm:$0xff]
    %v59 = vld [vmem:[#allocation5 + $0x80] sm:$0xff]
    %v60 = vld [vmem:[#allocation5 + $0x88] sm:$0xff]
    %v61 = vld [vmem:[#allocation5 + $0x90] sm:$0xff]
    %v62 = vld [vmem:[#allocation5 + $0x98] sm:$0xff]
    %v63 = vld [vmem:[#allocation5 + $0xa0] sm:$0xff]
    %v64 = vld [vmem:[#allocation5 + $0xa8] sm:$0xff]
    %v65 = vld [vmem:[#allocation5 + $0xb0] sm:$0xff]
    %v66 = vld [vmem:[#allocation5 + $0xb8] sm:$0xff]
    %v67 = vld [vmem:[#allocation5 + $0xc0] sm:$0xff]
    %v68 = vld [vmem:[#allocation5 + $0xc8] sm:$0xff]
    %v69 = vld [vmem:[#allocation5 + $0xd0] sm:$0xff]
    %v70 = vld [vmem:[#allocation5 + $0xd8] sm:$0xff]
    %v71 = vld [vmem:[#allocation5 + $0xe0] sm:$0xff]
    %v72 = vld [vmem:[#allocation5 + $0xe8] sm:$0xff]
    %v73 = vld [vmem:[#allocation5 + $0xf0] sm:$0xff]
    %v74 = vld [vmem:[#allocation5 + $0xf8] sm:$0xff]
    %v75 = vld [vmem:[#allocation5 + $0x100] sm:$0xff]
    %v76 = vld [vmem:[#allocation5 + $0x108] sm:$0xff]
    %v77 = vld [vmem:[#allocation5 + $0x110] sm:$0xff]
    %v78 = vld [vmem:[#allocation5 + $0x118] sm:$0xff]
    %v79 = vld [vmem:[#allocation5 + $0x120] sm:$0xff]
    %v80 = vld [vmem:[#allocation5 + $0x128] sm:$0xff]
    %v81 = vld [vmem:[#allocation5 + $0x130] sm:$0xff]
    %v82 = vld [vmem:[#allocation5 + $0x138] sm:$0xff]
    %v83 = vld [vmem:[#allocation5 + $0x140] sm:$0xff]
    %v84 = vld [vmem:[#allocation5 + $0x148] sm:$0xff]
    %v85 = vld [vmem:[#allocation5 + $0x150] sm:$0xff]
    %v86 = vld [vmem:[#allocation5 + $0x158] sm:$0xff]
    %v87 = vld [vmem:[#allocation5 + $0x160] sm:$0xff]
    %v88 = vld [vmem:[#allocation5 + $0x168] sm:$0xff]
    %v89 = vld [vmem:[#allocation5 + $0x170] sm:$0xff]
    %v90 = vld [vmem:[#allocation5 + $0x178] sm:$0xff]
    %v91 = vld [vmem:[#allocation5 + $0x180] sm:$0xff]
    %v92 = vld [vmem:[#allocation5 + $0x188] sm:$0xff]
    %v93 = vld [vmem:[#allocation5 + $0x190] sm:$0xff]
    %v94 = vld [vmem:[#allocation5 + $0x198] sm:$0xff]
    %v95 = vld [vmem:[#allocation5 + $0x1a0] sm:$0xff]
    %v96 = vld [vmem:[#allocation5 + $0x1a8] sm:$0xff]
    %v97 = vld [vmem:[#allocation5 + $0x1b0] sm:$0xff]
    %v98 = vld [vmem:[#allocation5 + $0x1b8] sm:$0xff]
    %v99 = vld [vmem:[#allocation5 + $0x1c0] sm:$0xff]
    %v100 = vld [vmem:[#allocation5 + $0x1c8] sm:$0xff]
    %v101 = vld [vmem:[#allocation5 + $0x1d0] sm:$0xff]
    %v102 = vld [vmem:[#allocation5 + $0x1d8] sm:$0xff]
    %v103 = vld [vmem:[#allocation5 + $0x1e0] sm:$0xff]
    %v104 = vld [vmem:[#allocation5 + $0x1e8] sm:$0xff]
    %v105 = vld [vmem:[#allocation5 + $0x1f0] sm:$0xff]
    %v106 = vld [vmem:[#allocation5 + $0x1f8] sm:$0xff]
    %v107 = vld [vmem:[#allocation5 + $0x200] sm:$0xff]
    %v108 = vld [vmem:[#allocation5 + $0x208] sm:$0xff]
    %v109 = vld [vmem:[#allocation5 + $0x210] sm:$0xff]
    %v110 = vld [vmem:[#allocation5 + $0x218] sm:$0xff]
    %v111 = vld [vmem:[#allocation5 + $0x220] sm:$0xff]
    %v112 = vld [vmem:[#allocation5 + $0x228] sm:$0xff]
    %v113 = vld [vmem:[#allocation5 + $0x230] sm:$0xff]
    %v114 = vld [vmem:[#allocation5 + $0x238] sm:$0xff]
    %v115 = vld [vmem:[#allocation5 + $0x240] sm:$0xff]
    %v116 = vld [vmem:[#allocation5 + $0x248] sm:$0xff]
    %v117 = vld [vmem:[#allocation5 + $0x250] sm:$0xff]
    %v118 = vld [vmem:[#allocation5 + $0x258] sm:$0xff]
    %v119 = vld [vmem:[#allocation5 + $0x260] sm:$0xff]
    %v120 = vld [vmem:[#allocation5 + $0x268] sm:$0xff]
    %v121 = vld [vmem:[#allocation5 + $0x270] sm:$0xff]
    %v122 = vld [vmem:[#allocation5 + $0x278] sm:$0xff]
    %v123 = vld [vmem:[#allocation5 + $0x280] sm:$0xff]
    %v124 = vld [vmem:[#allocation5 + $0x288] sm:$0xff]
    %v125 = vld [vmem:[#allocation5 + $0x290] sm:$0xff]
    %v126 = vld [vmem:[#allocation5 + $0x298] sm:$0xff]
    %v127 = vld [vmem:[#allocation5 + $0x2a0] sm:$0xff]
    %v128 = vld [vmem:[#allocation5 + $0x2a8] sm:$0xff]
    %v129 = vld [vmem:[#allocation5 + $0x2b0] sm:$0xff]
    %v130 = vld [vmem:[#allocation5 + $0x2b8] sm:$0xff]
    %v131 = vld [vmem:[#allocation5 + $0x2c0] sm:$0xff]
    %v132 = vld [vmem:[#allocation5 + $0x2c8] sm:$0xff]
    %v133 = vld [vmem:[#allocation5 + $0x2d0] sm:$0xff]
    %v134 = vld [vmem:[#allocation5 + $0x2d8] sm:$0xff]
    %v135 = vld [vmem:[#allocation5 + $0x2e0] sm:$0xff]
    %v136 = vld [vmem:[#allocation5 + $0x2e8] sm:$0xff]
    %v137 = vld [vmem:[#allocation5 + $0x2f0] sm:$0xff]
    %v138 = vld [vmem:[#allocation5 + $0x2f8] sm:$0xff]
    %v139 = vld [vmem:[#allocation5 + $0x300] sm:$0xff]
    %v140 = vld [vmem:[#allocation5 + $0x308] sm:$0xff]
    %v143 = vcombine.high %v41, %v41
    %v145 = vunpack.c.l.s4 1983009808
    %v146 = vunpack.c.0.s8 %v145
    %v147 = vlaneseq
    %v148 = vshrl.u32 %v147, 7
    %v149 = vsub.s32 %v146, %v148
    %v150 = vrot.slane %v41, %v149
    %v152 = vunpack.c.l.s4 1983009808
    %v153 = vunpack.c.0.s8 %v152
    %v154 = vlaneseq
    %v155 = vshrl.u32 %v154, 7
    %v156 = vsub.s32 %v153, %v155
    %v157 = vrot.slane %v143, %v156
    %v158 = vcombine.high %v150, %v150
    %v159 = vcombine.high %v157, %v157
    %v160 = vcombine.high %v42, %v42
    %v162 = vunpack.c.l.s4 1983009808
    %v163 = vunpack.c.0.s8 %v162
    %v164 = vlaneseq
    %v165 = vshrl.u32 %v164, 7
    %v166 = vsub.s32 %v163, %v165
    %v167 = vrot.slane %v42, %v166
    %v169 = vunpack.c.l.s4 1983009808
    %v170 = vunpack.c.0.s8 %v169
    %v171 = vlaneseq
    %v172 = vshrl.u32 %v171, 7
    %v173 = vsub.s32 %v170, %v172
    %v174 = vrot.slane %v160, %v173
    %v175 = vcombine.high %v167, %v167
    %vm182 = vcmask 130048
    %v183 = vsel %vm182, %v174, 0
    %185 = vmatprep.subr.mxu0 0.0
    %186 = vmatpush1.msra.mxu0 %v58
    %187 = vmatprep.subr.mxu0 0.0
    %188 = vmatpush1.msra.mxu0 %v57
    %189 = vmatprep.subr.mxu0 0.0
    %190 = vmatpush1.msra.mxu0 %v56
    %191 = vmatprep.subr.mxu0 0.0
    %192 = vmatpush1.msra.mxu0 %v55
    %193 = vmatprep.subr.mxu0 0.0
    %194 = vmatpush1.msra.mxu0 %v54
    %195 = vmatprep.subr.mxu0 0.0
    %196 = vmatpush1.msra.mxu0 %v53
    %197 = vmatprep.subr.mxu0 0.0
    %198 = vmatpush1.msra.mxu0 %v52
    %199 = vmatprep.subr.mxu0 0.0
    %200 = vmatpush1.msra.mxu0 %v51
    %201 = vmatprep.subr.mxu0 0.0
    %202 = vmatpush1.msra.mxu0 %v50
    %203 = vmatprep.subr.mxu0 0.0
    %204 = vmatpush1.msra.mxu0 %v49
    %205 = vmatprep.subr.mxu0 0.0
    %206 = vmatpush1.msra.mxu0 %v48
    %207 = vmatprep.subr.mxu0 0.0
    %208 = vmatpush1.msra.mxu0 %v47
    %209 = vmatprep.subr.mxu0 0.0
    %210 = vmatpush1.msra.mxu0 %v46
    %211 = vmatprep.subr.mxu0 0.0
    %212 = vmatpush1.msra.mxu0 %v45
    %213 = vmatprep.subr.mxu0 0.0
    %214 = vmatpush1.msra.mxu0 %v44
    %215 = vmatprep.subr.mxu0 0.0
    %216 = vmatpush1.msra.mxu0 %v43
    %217 = vmatprep.subr.mxu0 0.0
    %218 = vmatpush2.msra.mxu0 %v74
    %219 = vmatprep.subr.mxu0 0.0
    %220 = vmatpush2.msra.mxu0 %v73
    %221 = vmatprep.subr.mxu0 0.0
    %222 = vmatpush2.msra.mxu0 %v72
    %223 = vmatprep.subr.mxu0 0.0
    %224 = vmatpush2.msra.mxu0 %v71
    %225 = vmatprep.subr.mxu0 0.0
    %226 = vmatpush2.msra.mxu0 %v70
    %227 = vmatprep.subr.mxu0 0.0
    %228 = vmatpush2.msra.mxu0 %v69
    %229 = vmatprep.subr.mxu0 0.0
    %230 = vmatpush2.msra.mxu0 %v68
    %231 = vmatprep.subr.mxu0 0.0
    %232 = vmatpush2.msra.mxu0 %v67
    %233 = vmatprep.subr.mxu0 0.0
    %234 = vmatpush2.msra.mxu0 %v66
    %235 = vmatprep.subr.mxu0 0.0
    %236 = vmatpush2.msra.mxu0 %v65
    %237 = vmatprep.subr.mxu0 0.0
    %238 = vmatpush2.msra.mxu0 %v64
    %239 = vmatprep.subr.mxu0 0.0
    %240 = vmatpush2.msra.mxu0 %v63
    %241 = vmatprep.subr.mxu0 0.0
    %242 = vmatpush2.msra.mxu0 %v62
    %243 = vmatprep.subr.mxu0 0.0
    %244 = vmatpush2.msra.mxu0 %v61
    %245 = vmatprep.subr.mxu0 0.0
    %246 = vmatpush2.msra.mxu0 %v60
    %247 = vmatprep.subr.mxu0 0.0
    %248 = vmatpush2.msra.mxu0 %v59
    %249 = vmatprep.mubr.f32.mxu0 %v158
    %250 = vmatmul.mubr.f32.gmra.mxu0 %v150
    %v251 = vpop.f32.mrf.mxu0
    %v252 = vadd.f32 0.0, %v251
    %v253 = vpop.f32.mrf.mxu0
    %254 = vdwg.mxu0
    %255 = vmatprep.subr.mxu0 0.0
    %256 = vmatpush1.msra.mxu0 %v90
    %257 = vmatprep.subr.mxu0 0.0
    %258 = vmatpush1.msra.mxu0 %v89
    %259 = vmatprep.subr.mxu0 0.0
    %260 = vmatpush1.msra.mxu0 %v88
    %261 = vmatprep.subr.mxu0 0.0
    %262 = vmatpush1.msra.mxu0 %v87
    %263 = vmatprep.subr.mxu0 0.0
    %264 = vmatpush1.msra.mxu0 %v86
    %265 = vmatprep.subr.mxu0 0.0
    %266 = vmatpush1.msra.mxu0 %v85
    %267 = vmatprep.subr.mxu0 0.0
    %268 = vmatpush1.msra.mxu0 %v84
    %269 = vmatprep.subr.mxu0 0.0
    %270 = vmatpush1.msra.mxu0 %v83
    %271 = vmatprep.subr.mxu0 0.0
    %272 = vmatpush1.msra.mxu0 %v82
    %273 = vmatprep.subr.mxu0 0.0
    %274 = vmatpush1.msra.mxu0 %v81
    %275 = vmatprep.subr.mxu0 0.0
    %276 = vmatpush1.msra.mxu0 %v80
    %277 = vmatprep.subr.mxu0 0.0
    %278 = vmatpush1.msra.mxu0 %v79
    %279 = vmatprep.subr.mxu0 0.0
    %280 = vmatpush1.msra.mxu0 %v78
    %281 = vmatprep.subr.mxu0 0.0
    %282 = vmatpush1.msra.mxu0 %v77
    %283 = vmatprep.subr.mxu0 0.0
    %284 = vmatpush1.msra.mxu0 %v76
    %285 = vmatprep.subr.mxu0 0.0
    %286 = vmatpush1.msra.mxu0 %v75
    %287 = vmatprep.subr.mxu0 0.0
    %288 = vmatpush2.msra.mxu0 %v106
    %289 = vmatprep.subr.mxu0 0.0
    %290 = vmatpush2.msra.mxu0 %v105
    %291 = vmatprep.subr.mxu0 0.0
    %292 = vmatpush2.msra.mxu0 %v104
    %293 = vmatprep.subr.mxu0 0.0
    %294 = vmatpush2.msra.mxu0 %v103
    %295 = vmatprep.subr.mxu0 0.0
    %296 = vmatpush2.msra.mxu0 %v102
    %297 = vmatprep.subr.mxu0 0.0
    %298 = vmatpush2.msra.mxu0 %v101
    %299 = vmatprep.subr.mxu0 0.0
    %300 = vmatpush2.msra.mxu0 %v100
    %301 = vmatprep.subr.mxu0 0.0
    %302 = vmatpush2.msra.mxu0 %v99
    %303 = vmatprep.subr.mxu0 0.0
    %304 = vmatpush2.msra.mxu0 %v98
    %305 = vmatprep.subr.mxu0 0.0
    %306 = vmatpush2.msra.mxu0 %v97
    %307 = vmatprep.subr.mxu0 0.0
    %308 = vmatpush2.msra.mxu0 %v96
    %309 = vmatprep.subr.mxu0 0.0
    %310 = vmatpush2.msra.mxu0 %v95
    %311 = vmatprep.subr.mxu0 0.0
    %312 = vmatpush2.msra.mxu0 %v94
    %313 = vmatprep.subr.mxu0 0.0
    %314 = vmatpush2.msra.mxu0 %v93
    %315 = vmatprep.subr.mxu0 0.0
    %316 = vmatpush2.msra.mxu0 %v92
    %317 = vmatprep.subr.mxu0 0.0
    %318 = vmatpush2.msra.mxu0 %v91
    %319 = vmatprep.mubr.f32.mxu0 %v159
    %320 = vmatmul.mubr.f32.gmra.mxu0 %v157
    %v321 = vpop.f32.mrf.mxu0
    %v322 = vadd.f32 %v252, %v321
    %v323 = vpop.f32.mrf.mxu0
    %324 = vdwg.mxu0
    %325 = vmatprep.subr.mxu0 0.0
    %326 = vmatpush1.msra.mxu0 %v122
    %327 = vmatprep.subr.mxu0 0.0
    %328 = vmatpush1.msra.mxu0 %v121
    %329 = vmatprep.subr.mxu0 0.0
    %330 = vmatpush1.msra.mxu0 %v120
    %331 = vmatprep.subr.mxu0 0.0
    %332 = vmatpush1.msra.mxu0 %v119
    %333 = vmatprep.subr.mxu0 0.0
    %334 = vmatpush1.msra.mxu0 %v118
    %335 = vmatprep.subr.mxu0 0.0
    %336 = vmatpush1.msra.mxu0 %v117
    %337 = vmatprep.subr.mxu0 0.0
    %338 = vmatpush1.msra.mxu0 %v116
    %339 = vmatprep.subr.mxu0 0.0
    %340 = vmatpush1.msra.mxu0 %v115
    %341 = vmatprep.subr.mxu0 0.0
    %342 = vmatpush1.msra.mxu0 %v114
    %343 = vmatprep.subr.mxu0 0.0
    %344 = vmatpush1.msra.mxu0 %v113
    %345 = vmatprep.subr.mxu0 0.0
    %346 = vmatpush1.msra.mxu0 %v112
    %347 = vmatprep.subr.mxu0 0.0
    %348 = vmatpush1.msra.mxu0 %v111
    %349 = vmatprep.subr.mxu0 0.0
    %350 = vmatpush1.msra.mxu0 %v110
    %351 = vmatprep.subr.mxu0 0.0
    %352 = vmatpush1.msra.mxu0 %v109
    %353 = vmatprep.subr.mxu0 0.0
    %354 = vmatpush1.msra.mxu0 %v108
    %355 = vmatprep.subr.mxu0 0.0
    %356 = vmatpush1.msra.mxu0 %v107
    %357 = vmatprep.subr.mxu0 0.0
    %358 = vmatpush2.msra.mxu0 %v138
    %359 = vmatprep.subr.mxu0 0.0
    %360 = vmatpush2.msra.mxu0 %v137
    %361 = vmatprep.subr.mxu0 0.0
    %362 = vmatpush2.msra.mxu0 %v136
    %363 = vmatprep.subr.mxu0 0.0
    %364 = vmatpush2.msra.mxu0 %v135
    %365 = vmatprep.subr.mxu0 0.0
    %366 = vmatpush2.msra.mxu0 %v134
    %367 = vmatprep.subr.mxu0 0.0
    %368 = vmatpush2.msra.mxu0 %v133
    %369 = vmatprep.subr.mxu0 0.0
    %370 = vmatpush2.msra.mxu0 %v132
    %371 = vmatprep.subr.mxu0 0.0
    %372 = vmatpush2.msra.mxu0 %v131
    %373 = vmatprep.subr.mxu0 0.0
    %374 = vmatpush2.msra.mxu0 %v130
    %375 = vmatprep.subr.mxu0 0.0
    %376 = vmatpush2.msra.mxu0 %v129
    %377 = vmatprep.subr.mxu0 0.0
    %378 = vmatpush2.msra.mxu0 %v128
    %379 = vmatprep.subr.mxu0 0.0
    %380 = vmatpush2.msra.mxu0 %v127
    %381 = vmatprep.subr.mxu0 0.0
    %382 = vmatpush2.msra.mxu0 %v126
    %383 = vmatprep.subr.mxu0 0.0
    %384 = vmatpush2.msra.mxu0 %v125
    %385 = vmatprep.subr.mxu0 0.0
    %386 = vmatpush2.msra.mxu0 %v124
    %387 = vmatprep.subr.mxu0 0.0
    %388 = vmatpush2.msra.mxu0 %v123
    %389 = vmatprep.mubr.f32.mxu0 %v175
    %390 = vmatmul.mubr.f32.gmra.mxu0 %v167
    %v391 = vpop.f32.mrf.mxu0
    %v392 = vadd.f32 %v322, %v391
    %v393 = vpop.f32.mrf.mxu0
    %394 = vdwg.mxu0
    %395 = vmatprep.subr.mxu0 0.0
    %396 = vmatpush1.msra.mxu0 0.0
    %397 = vmatprep.subr.mxu0 0.0
    %398 = vmatpush1.msra.mxu0 0.0
    %399 = vmatprep.subr.mxu0 0.0
    %400 = vmatpush1.msra.mxu0 0.0
    %401 = vmatprep.subr.mxu0 0.0
    %402 = vmatpush1.msra.mxu0 0.0
    %403 = vmatprep.subr.mxu0 0.0
    %404 = vmatpush1.msra.mxu0 0.0
    %405 = vmatprep.subr.mxu0 0.0
    %406 = vmatpush1.msra.mxu0 0.0
    %407 = vmatprep.subr.mxu0 0.0
    %408 = vmatpush1.msra.mxu0 0.0
    %409 = vmatprep.subr.mxu0 0.0
    %410 = vmatpush1.msra.mxu0 0.0
    %411 = vmatprep.subr.mxu0 0.0
    %412 = vmatpush1.msra.mxu0 0.0
    %413 = vmatprep.subr.mxu0 0.0
    %414 = vmatpush1.msra.mxu0 0.0
    %415 = vmatprep.subr.mxu0 0.0
    %416 = vmatpush1.msra.mxu0 0.0
    %417 = vmatprep.subr.mxu0 0.0
    %418 = vmatpush1.msra.mxu0 0.0
    %419 = vmatprep.subr.mxu0 0.0
    %420 = vmatpush1.msra.mxu0 0.0
    %421 = vmatprep.subr.mxu0 0.0
    %422 = vmatpush1.msra.mxu0 0.0
    %423 = vmatprep.subr.mxu0 0.0
    %424 = vmatpush1.msra.mxu0 %v140
    %425 = vmatprep.subr.mxu0 0.0
    %426 = vmatpush1.msra.mxu0 %v139
    %427 = vmatprep.subr.mxu0 0.0
    %428 = vmatpush2.msra.mxu0 0.0
    %429 = vmatprep.subr.mxu0 0.0
    %430 = vmatpush2.msra.mxu0 0.0
    %431 = vmatprep.subr.mxu0 0.0
    %432 = vmatpush2.msra.mxu0 0.0
    %433 = vmatprep.subr.mxu0 0.0
    %434 = vmatpush2.msra.mxu0 0.0
    %435 = vmatprep.subr.mxu0 0.0
    %436 = vmatpush2.msra.mxu0 0.0
    %437 = vmatprep.subr.mxu0 0.0
    %438 = vmatpush2.msra.mxu0 0.0
    %439 = vmatprep.subr.mxu0 0.0
    %440 = vmatpush2.msra.mxu0 0.0
    %441 = vmatprep.subr.mxu0 0.0
    %442 = vmatpush2.msra.mxu0 0.0
    %443 = vmatprep.subr.mxu0 0.0
    %444 = vmatpush2.msra.mxu0 0.0
    %445 = vmatprep.subr.mxu0 0.0
    %446 = vmatpush2.msra.mxu0 0.0
    %447 = vmatprep.subr.mxu0 0.0
    %448 = vmatpush2.msra.mxu0 0.0
    %449 = vmatprep.subr.mxu0 0.0
    %450 = vmatpush2.msra.mxu0 0.0
    %451 = vmatprep.subr.mxu0 0.0
    %452 = vmatpush2.msra.mxu0 0.0
    %453 = vmatprep.subr.mxu0 0.0
    %454 = vmatpush2.msra.mxu0 0.0
    %455 = vmatprep.subr.mxu0 0.0
    %456 = vmatpush2.msra.mxu0 0.0
    %457 = vmatprep.subr.mxu0 0.0
    %458 = vmatpush2.msra.mxu0 0.0
    %459 = vmatprep.mubr.f32.mxu0 0.0
    %460 = vmatmul.mubr.f32.gmra.mxu0 %v183
    %v461 = vpop.f32.mrf.mxu0
    %v462 = vadd.f32 %v392, %v461
    %v463 = vpop.f32.mrf.mxu0
    %464 = vdwg.mxu0
    %v465 = vld [vmem:[%s2] sm:$0x1]
    %v467 = vlaneseq
    %v468 = vshrl.u32 %v467, 7
    %v469 = vsub.s32 0, %v468
    %v470 = vrot.slane %v465, %v469
    %v472 = vadd.f32 %v462, %v470
    %vm473 = vcmask 74752
    %474 = vst.msk [vmem:[#allocation7] sm:$0x3] %vm473, %v472
    // Predicated region
    $region22: #{tpu_custom_call.1} parent=1 // pred_check
      _
    $region23: #{tpu_custom_call.1} parent=1 // pred_check_branch
      %476 = sbr.rel (0) target = $region25
    $region24: #{tpu_custom_call.1} parent=1 // pred_region
      %s478 = ssub.s32 32, 32
      %479 = vsyncadd [#allocation4], %s478
      %s481 = sshll.u32 [#allocation7], 4
      %s482 = int_to_ptr.vmem [resolvable:$true] %s481
      %484 = dma.vmem_to_hbm [thread:$0]  %s482, 32, %s3, [#allocation4]
    $region25: #{tpu_custom_call.1} parent=1 // pred_fallthru
      _
    // Predicated region
    $region26: #{tpu_custom_call.1} parent=1 // pred_check
      _
    $region27: #{tpu_custom_call.1} parent=1 // pred_check_branch
      %486 = sbr.rel (0) target = $region29
    $region28: #{tpu_custom_call.1} parent=1 // pred_region
      %487 = dma.done [#allocation4], 32
    $region29: #{tpu_custom_call.1} parent=1 // pred_fallthru
      _
    %488 = vsyncpa [#allocation3], 1
    %489 = vsyncpa [#allocation6], 1
    %490 = vsyncpa [#allocation4], 1

</llo_original>
